<compile_context>
chip_gen: v5e
topology: v5e:2x2
jax: 0.10.0
libtpu: 0.0.40
codegen_flags: <defaults>
</compile_context>

<pallas_src>
import jax
import jax.numpy as jnp
import numpy as np
from jax.experimental import pallas as pl
from jax.experimental.pallas import tpu as pltpu


def rnn_kernel(x_ref, wih_ref, whh_ref, b_ref, wfc_ref, bfc_ref, out_ref, xproj_ref):
    """x_ref: (T*B, E) time-major flat; out_ref: (B, O); xproj_ref: (T*B, H) scratch."""
    B = out_ref.shape[0]
    H = whh_ref.shape[0]
    T = x_ref.shape[0] // B

    # (1) Input projection for ALL timesteps in ONE MXU call (off the serial chain),
    #     with the pre-summed bias folded in so the recurrence body has no extra add.
    xproj_ref[...] = (
        jnp.dot(x_ref[...], wih_ref[...], preferred_element_type=jnp.float32)
        + b_ref[...])

    # (2) Serial recurrence: h_t = tanh(pre_t + h_{t-1} @ W_hh).
    w_hh = whh_ref[...]                              # hoisted load, not re-emitted per step
    h0 = jnp.zeros((B, H), jnp.float32)

    def step(t, h):
        start = pl.multiple_of(t * B, 8)             # B is padded to a multiple of 8
        pre_t = xproj_ref[pl.ds(start, B), :]        # (B, H)
        return jnp.tanh(pre_t + jnp.dot(h, w_hh, preferred_element_type=jnp.float32))

    h_last = jax.lax.fori_loop(0, T, step, h0, unroll=True)

    # (3) Final Linear on the last hidden state.
    # TODO(synk): output last dim O < 128 lowers to one masked vst; pad O to 128 if O grows.
    out_ref[...] = (
        jnp.dot(h_last, wfc_ref[...], preferred_element_type=jnp.float32)
        + bfc_ref[...]).astype(out_ref.dtype)


def sentiment_rnn_forward(token_ids, params):
    """token_ids: (B, T) int32. Returns logits (B, output_size)."""
    emb_table = params["embedding"]            # (V, E)
    w_ih = params["w_ih"]                      # (E, H)  (PyTorch W_ih pre-transposed)
    w_hh = params["w_hh"]                      # (H, H)
    bias = params["b_ih"] + params["b_hh"]     # (1, H)  pre-summed in the wrapper
    w_fc = params["w_fc"]                      # (H, O)
    b_fc = params["b_fc"]                      # (1, O)

    B, T = token_ids.shape
    E, H = w_ih.shape
    O = w_fc.shape[1]

    # Pad batch up to a sublane multiple (8) so the recurrence tiles are not all-masked rows.
    B_pad = ((B + 7) // 8) * 8
    ids = jnp.pad(token_ids, ((0, B_pad - B), (0, 0)))   # padded rows read token 0; sliced off below

    # Embedding lookup (data-dependent gather) kept as JAX glue; gathered directly in
    # time-major order (no extra transpose pass) and flattened to (T*B_pad, E).
    # TODO(synk): for large E/V, move the gather into the kernel via scalar-prefetched ids + per-row DMA.
    x_flat = jnp.take(emb_table, ids.T, axis=0).reshape(T * B_pad, E).astype(jnp.float32)
    # TODO(synk): on v6e/v7x cast x/weights to bf16 for the MXU (keep f32 accumulation); kept f32
    # here so the demo validates tightly against the f32 reference (v5e has no bf16 VPU/EUP anyway).

    vmem = pl.BlockSpec(memory_space=pltpu.MemorySpace.VMEM)   # whole array resident in VMEM

    out_pad = pl.pallas_call(
        rnn_kernel,
        out_shape=jax.ShapeDtypeStruct((B_pad, O), jnp.float32),
        in_specs=[vmem] * 6,
        out_specs=vmem,
        scratch_shapes=[pltpu.VMEM((T * B_pad, H), jnp.float32)],   # hoisted input projection
    )(x_flat, w_ih, w_hh, bias, w_fc, b_fc)
    return out_pad[:B]


def make_params(key, vocab_size, embed_size, hidden_size, output_size):
    ks = jax.random.split(key, 7)
    s_rnn = 1.0 / np.sqrt(hidden_size)
    s_fc = 1.0 / np.sqrt(hidden_size)
    return {
        "embedding": jax.random.normal(ks[0], (vocab_size, embed_size), jnp.float32),
        # PyTorch stores W_ih (H, E), W_hh (H, H); we keep them pre-transposed for x @ W.
        "w_ih": jax.random.uniform(ks[1], (embed_size, hidden_size), jnp.float32, -s_rnn, s_rnn),
        "w_hh": jax.random.uniform(ks[2], (hidden_size, hidden_size), jnp.float32, -s_rnn, s_rnn),
        "b_ih": jax.random.uniform(ks[3], (1, hidden_size), jnp.float32, -s_rnn, s_rnn),
        "b_hh": jax.random.uniform(ks[4], (1, hidden_size), jnp.float32, -s_rnn, s_rnn),
        "w_fc": jax.random.uniform(ks[5], (hidden_size, output_size), jnp.float32, -s_fc, s_fc),
        "b_fc": jax.random.uniform(ks[6], (1, output_size), jnp.float32, -s_fc, s_fc),
    }


def reference_forward(token_ids, params):
    """Pure-JAX reference replicating nn.Embedding -> nn.RNN -> nn.Linear(out[:, -1, :])."""
    x = jnp.take(params["embedding"], token_ids, axis=0)       # (B, T, E)
    B = x.shape[0]
    H = params["w_hh"].shape[0]
    h0 = jnp.zeros((B, H), jnp.float32)

    def step(h, x_t):
        h_new = jnp.tanh(x_t @ params["w_ih"] + h @ params["w_hh"]
                         + params["b_ih"] + params["b_hh"])
        return h_new, None

    x_tbe = jnp.transpose(x, (1, 0, 2))
    h_last, _ = jax.lax.scan(step, h0, x_tbe)
    return h_last @ params["w_fc"] + params["b_fc"]


if __name__ == "__main__":
    vocab_size, embed_size, hidden_size, output_size = 50, 16, 32, 4
    B, T = 2, 8

    key = jax.random.PRNGKey(0)
    k_tok, k_par = jax.random.split(key)
    token_ids = jax.random.randint(k_tok, (B, T), 0, vocab_size, dtype=jnp.int32)
    params = make_params(k_par, vocab_size, embed_size, hidden_size, output_size)

    out = jax.block_until_ready(sentiment_rnn_forward(token_ids, params))
    ref = jax.block_until_ready(reference_forward(token_ids, params))
    np.testing.assert_allclose(np.asarray(out), np.asarray(ref), rtol=1e-5, atol=1e-5)

    print("KERNEL_OK")
</pallas_src>

<mosaic_0001>
module attributes {stable_mosaic.version = 11 : i64} {
  func.func @rnn_kernel(%arg0: memref<64x16xf32, #tpu.memory_space<vmem>>, %arg1: memref<16x32xf32, #tpu.memory_space<vmem>>, %arg2: memref<32x32xf32, #tpu.memory_space<vmem>>, %arg3: memref<1x32xf32, #tpu.memory_space<vmem>>, %arg4: memref<32x4xf32, #tpu.memory_space<vmem>>, %arg5: memref<1x4xf32, #tpu.memory_space<vmem>>, %arg6: memref<8x4xf32, #tpu.memory_space<vmem>>, %arg7: memref<64x32xf32, #tpu.memory_space<vmem>>) attributes {dimension_semantics = [], scalar_prefetch = 0 : i64, scratch_operands = 1 : i64, tpu.core_type = #tpu.core_type<tc>} {
    %c0 = arith.constant 0 : index
    %c0_0 = arith.constant 0 : index
    %0 = vector.load %arg0[%c0, %c0_0] : memref<64x16xf32, #tpu.memory_space<vmem>>, vector<64x16xf32>
    %c0_1 = arith.constant 0 : index
    %c0_2 = arith.constant 0 : index
    %1 = vector.load %arg1[%c0_1, %c0_2] : memref<16x32xf32, #tpu.memory_space<vmem>>, vector<16x32xf32>
    %cst = arith.constant dense<0.000000e+00> : vector<64x32xf32>
    %2 = tpu.matmul %0, %1, %cst {dimension_numbers = #tpu.dot_dimension_numbers<[1], [0], [0], [1], [0, 0, 1, 1], [], []>} : vector<64x16xf32>, vector<16x32xf32>, vector<64x32xf32> -> vector<64x32xf32>
    %c0_3 = arith.constant 0 : index
    %c0_4 = arith.constant 0 : index
    %3 = vector.load %arg3[%c0_3, %c0_4] : memref<1x32xf32, #tpu.memory_space<vmem>>, vector<1x32xf32>
    %4 = vector.broadcast %3 : vector<1x32xf32> to vector<64x32xf32>
    %5 = arith.addf %2, %4 : vector<64x32xf32>
    %c0_5 = arith.constant 0 : index
    %c0_6 = arith.constant 0 : index
    %6 = vector.load %arg7[%c0_5, %c0_6] : memref<64x32xf32, #tpu.memory_space<vmem>>, vector<64x32xf32>
    tpu.vector_store %arg7[%c0_5, %c0_6], %5 {strides = array<i32>} : memref<64x32xf32, #tpu.memory_space<vmem>>, vector<64x32xf32>,
    %c0_7 = arith.constant 0 : index
    %c0_8 = arith.constant 0 : index
    %7 = vector.load %arg2[%c0_7, %c0_8] : memref<32x32xf32, #tpu.memory_space<vmem>>, vector<32x32xf32>
    %cst_9 = arith.constant 0.000000e+00 : f32
    %8 = vector.broadcast %cst_9 : f32 to vector<8x32xf32>
    %c0_i32 = arith.constant 0 : i32
    %c8_i32 = arith.constant 8 : i32
    %9 = arith.muli %c0_i32, %c8_i32 : i32
    %10 = tpu.assume_multiple %9, 8 : i32
    %11 = arith.index_cast %10 : i32 to index
    %c0_10 = arith.constant 0 : index
    %12 = vector.load %arg7[%11, %c0_10] : memref<64x32xf32, #tpu.memory_space<vmem>>, vector<8x32xf32>
    %cst_11 = arith.constant dense<0.000000e+00> : vector<8x32xf32>
    %13 = tpu.matmul %8, %7, %cst_11 {dimension_numbers = #tpu.dot_dimension_numbers<[1], [0], [0], [1], [0, 0, 1, 1], [], []>} : vector<8x32xf32>, vector<32x32xf32>, vector<8x32xf32> -> vector<8x32xf32>
    %14 = arith.addf %12, %13 : vector<8x32xf32>
    %15 = math.tanh %14 : vector<8x32xf32>
    %c1_i32 = arith.constant 1 : i32
    %c8_i32_12 = arith.constant 8 : i32
    %16 = arith.muli %c1_i32, %c8_i32_12 : i32
    %17 = tpu.assume_multiple %16, 8 : i32
    %18 = arith.index_cast %17 : i32 to index
    %c0_13 = arith.constant 0 : index
    %19 = vector.load %arg7[%18, %c0_13] : memref<64x32xf32, #tpu.memory_space<vmem>>, vector<8x32xf32>
    %cst_14 = arith.constant dense<0.000000e+00> : vector<8x32xf32>
    %20 = tpu.matmul %15, %7, %cst_14 {dimension_numbers = #tpu.dot_dimension_numbers<[1], [0], [0], [1], [0, 0, 1, 1], [], []>} : vector<8x32xf32>, vector<32x32xf32>, vector<8x32xf32> -> vector<8x32xf32>
    %21 = arith.addf %19, %20 : vector<8x32xf32>
    %22 = math.tanh %21 : vector<8x32xf32>
    %c2_i32 = arith.constant 2 : i32
    %c8_i32_15 = arith.constant 8 : i32
    %23 = arith.muli %c2_i32, %c8_i32_15 : i32
    %24 = tpu.assume_multiple %23, 8 : i32
    %25 = arith.index_cast %24 : i32 to index
    %c0_16 = arith.constant 0 : index
    %26 = vector.load %arg7[%25, %c0_16] : memref<64x32xf32, #tpu.memory_space<vmem>>, vector<8x32xf32>
    %cst_17 = arith.constant dense<0.000000e+00> : vector<8x32xf32>
    %27 = tpu.matmul %22, %7, %cst_17 {dimension_numbers = #tpu.dot_dimension_numbers<[1], [0], [0], [1], [0, 0, 1, 1], [], []>} : vector<8x32xf32>, vector<32x32xf32>, vector<8x32xf32> -> vector<8x32xf32>
    %28 = arith.addf %26, %27 : vector<8x32xf32>
    %29 = math.tanh %28 : vector<8x32xf32>
    %c3_i32 = arith.constant 3 : i32
    %c8_i32_18 = arith.constant 8 : i32
    %30 = arith.muli %c3_i32, %c8_i32_18 : i32
    %31 = tpu.assume_multiple %30, 8 : i32
    %32 = arith.index_cast %31 : i32 to index
    %c0_19 = arith.constant 0 : index
    %33 = vector.load %arg7[%32, %c0_19] : memref<64x32xf32, #tpu.memory_space<vmem>>, vector<8x32xf32>
    %cst_20 = arith.constant dense<0.000000e+00> : vector<8x32xf32>
    %34 = tpu.matmul %29, %7, %cst_20 {dimension_numbers = #tpu.dot_dimension_numbers<[1], [0], [0], [1], [0, 0, 1, 1], [], []>} : vector<8x32xf32>, vector<32x32xf32>, vector<8x32xf32> -> vector<8x32xf32>
    %35 = arith.addf %33, %34 : vector<8x32xf32>
    %36 = math.tanh %35 : vector<8x32xf32>
    %c4_i32 = arith.constant 4 : i32
    %c8_i32_21 = arith.constant 8 : i32
    %37 = arith.muli %c4_i32, %c8_i32_21 : i32
    %38 = tpu.assume_multiple %37, 8 : i32
    %39 = arith.index_cast %38 : i32 to index
    %c0_22 = arith.constant 0 : index
    %40 = vector.load %arg7[%39, %c0_22] : memref<64x32xf32, #tpu.memory_space<vmem>>, vector<8x32xf32>
    %cst_23 = arith.constant dense<0.000000e+00> : vector<8x32xf32>
    %41 = tpu.matmul %36, %7, %cst_23 {dimension_numbers = #tpu.dot_dimension_numbers<[1], [0], [0], [1], [0, 0, 1, 1], [], []>} : vector<8x32xf32>, vector<32x32xf32>, vector<8x32xf32> -> vector<8x32xf32>
    %42 = arith.addf %40, %41 : vector<8x32xf32>
    %43 = math.tanh %42 : vector<8x32xf32>
    %c5_i32 = arith.constant 5 : i32
    %c8_i32_24 = arith.constant 8 : i32
    %44 = arith.muli %c5_i32, %c8_i32_24 : i32
    %45 = tpu.assume_multiple %44, 8 : i32
    %46 = arith.index_cast %45 : i32 to index
    %c0_25 = arith.constant 0 : index
    %47 = vector.load %arg7[%46, %c0_25] : memref<64x32xf32, #tpu.memory_space<vmem>>, vector<8x32xf32>
    %cst_26 = arith.constant dense<0.000000e+00> : vector<8x32xf32>
    %48 = tpu.matmul %43, %7, %cst_26 {dimension_numbers = #tpu.dot_dimension_numbers<[1], [0], [0], [1], [0, 0, 1, 1], [], []>} : vector<8x32xf32>, vector<32x32xf32>, vector<8x32xf32> -> vector<8x32xf32>
    %49 = arith.addf %47, %48 : vector<8x32xf32>
    %50 = math.tanh %49 : vector<8x32xf32>
    %c6_i32 = arith.constant 6 : i32
    %c8_i32_27 = arith.constant 8 : i32
    %51 = arith.muli %c6_i32, %c8_i32_27 : i32
    %52 = tpu.assume_multiple %51, 8 : i32
    %53 = arith.index_cast %52 : i32 to index
    %c0_28 = arith.constant 0 : index
    %54 = vector.load %arg7[%53, %c0_28] : memref<64x32xf32, #tpu.memory_space<vmem>>, vector<8x32xf32>
    %cst_29 = arith.constant dense<0.000000e+00> : vector<8x32xf32>
    %55 = tpu.matmul %50, %7, %cst_29 {dimension_numbers = #tpu.dot_dimension_numbers<[1], [0], [0], [1], [0, 0, 1, 1], [], []>} : vector<8x32xf32>, vector<32x32xf32>, vector<8x32xf32> -> vector<8x32xf32>
    %56 = arith.addf %54, %55 : vector<8x32xf32>
    %57 = math.tanh %56 : vector<8x32xf32>
    %c7_i32 = arith.constant 7 : i32
    %c8_i32_30 = arith.constant 8 : i32
    %58 = arith.muli %c7_i32, %c8_i32_30 : i32
    %59 = tpu.assume_multiple %58, 8 : i32
    %60 = arith.index_cast %59 : i32 to index
    %c0_31 = arith.constant 0 : index
    %61 = vector.load %arg7[%60, %c0_31] : memref<64x32xf32, #tpu.memory_space<vmem>>, vector<8x32xf32>
    %cst_32 = arith.constant dense<0.000000e+00> : vector<8x32xf32>
    %62 = tpu.matmul %57, %7, %cst_32 {dimension_numbers = #tpu.dot_dimension_numbers<[1], [0], [0], [1], [0, 0, 1, 1], [], []>} : vector<8x32xf32>, vector<32x32xf32>, vector<8x32xf32> -> vector<8x32xf32>
    %63 = arith.addf %61, %62 : vector<8x32xf32>
    %64 = math.tanh %63 : vector<8x32xf32>
    %c8_i32_33 = arith.constant 8 : i32
    %c0_34 = arith.constant 0 : index
    %c0_35 = arith.constant 0 : index
    %65 = vector.load %arg4[%c0_34, %c0_35] : memref<32x4xf32, #tpu.memory_space<vmem>>, vector<32x4xf32>
    %cst_36 = arith.constant dense<0.000000e+00> : vector<8x4xf32>
    %66 = tpu.matmul %64, %65, %cst_36 {dimension_numbers = #tpu.dot_dimension_numbers<[1], [0], [0], [1], [0, 0, 1, 1], [], []>} : vector<8x32xf32>, vector<32x4xf32>, vector<8x4xf32> -> vector<8x4xf32>
    %c0_37 = arith.constant 0 : index
    %c0_38 = arith.constant 0 : index
    %67 = vector.load %arg5[%c0_37, %c0_38] : memref<1x4xf32, #tpu.memory_space<vmem>>, vector<1x4xf32>
    %68 = vector.broadcast %67 : vector<1x4xf32> to vector<8x4xf32>
    %69 = arith.addf %66, %68 : vector<8x4xf32>
    %c0_39 = arith.constant 0 : index
    %c0_40 = arith.constant 0 : index
    %70 = vector.load %arg6[%c0_39, %c0_40] : memref<8x4xf32, #tpu.memory_space<vmem>>, vector<8x4xf32>
    tpu.vector_store %arg6[%c0_39, %c0_40], %69 {strides = array<i32>} : memref<8x4xf32, #tpu.memory_space<vmem>>, vector<8x4xf32>,
    return
  }
}

</mosaic_0001>

<llo_original>
// kernel: tpu_custom_call.1
$region0: #{tpu_custom_call.1}
  #allocation0 [shape = 'u32[]', space=smem, size = 0x4, offset = 0x4, fixed_abs, tag = 'smem constant byte address 0x4 - core index']
  #allocation1 [shape = 'u32[72,128]{1,0:T(1,128)}', space=vmem, size = 0x9000, scoped, tag = 'internal scratch']
  #allocation2 [shape = 'f32[64,32]{1,0:T(8,128)}', space=vmem, size = 0x8000, scoped, tag = 'scratch operand']
  %s0 = inlined_call_operand.vmem [shape: f32[64,16], index: 0, kind: input, shape index: {}]
  %s1 = inlined_call_operand.vmem [shape: f32[16,32], index: 1, kind: input, shape index: {}]
  %s2 = inlined_call_operand.vmem [shape: f32[32,32], index: 2, kind: input, shape index: {}]
  %s3 = inlined_call_operand.vmem [shape: f32[1,32], index: 3, kind: input, shape index: {}]
  %s4 = inlined_call_operand.vmem [shape: f32[32,4], index: 4, kind: input, shape index: {}]
  %s5 = inlined_call_operand.vmem [shape: f32[1,4], index: 5, kind: input, shape index: {}]
  %s6 = inlined_call_operand.vmem [shape: f32[8,4], index: 6, kind: output, shape index: {}]
  %s7 = sld [smem:[#allocation0]]
  $region34: #{tpu_custom_call.1} parent=0
    _
  %s9 = ssub.s32 1, %s7
  %s10 = scalar_select 0, %s9, %s7
  // Predicated region
  $region2: #{tpu_custom_call.1} parent=0 // pred_check
    _
  $region3: #{tpu_custom_call.1} parent=0 // pred_check_branch
    %12 = sbr.rel (0) target = $region5
  $region4: #{tpu_custom_call.1} parent=0 // pred_region
    _
  $region5: #{tpu_custom_call.1} parent=0 // pred_fallthru
    _
  // Predicated region
  $region6: #{tpu_custom_call.1} parent=0 // pred_check
    _
  $region7: #{tpu_custom_call.1} parent=0 // pred_check_branch
    %14 = sbr.rel (0) target = $region9
  $region8: #{tpu_custom_call.1} parent=0 // pred_region
    _
  $region9: #{tpu_custom_call.1} parent=0 // pred_fallthru
    _
  // Predicated region
  $region10: #{tpu_custom_call.1} parent=0 // pred_check
    _
  $region11: #{tpu_custom_call.1} parent=0 // pred_check_branch
    %16 = sbr.rel (0) target = $region13
  $region12: #{tpu_custom_call.1} parent=0 // pred_region
    _
  $region13: #{tpu_custom_call.1} parent=0 // pred_fallthru
    _
  // Predicated region
  $region14: #{tpu_custom_call.1} parent=0 // pred_check
    _
  $region15: #{tpu_custom_call.1} parent=0 // pred_check_branch
    %18 = sbr.rel (0) target = $region17
  $region16: #{tpu_custom_call.1} parent=0 // pred_region
    _
  $region17: #{tpu_custom_call.1} parent=0 // pred_fallthru
    _
  // Predicated region
  $region18: #{tpu_custom_call.1} parent=0 // pred_check
    _
  $region19: #{tpu_custom_call.1} parent=0 // pred_check_branch
    %20 = sbr.rel (0) target = $region21
  $region20: #{tpu_custom_call.1} parent=0 // pred_region
    _
  $region21: #{tpu_custom_call.1} parent=0 // pred_fallthru
    _
  // Predicated region
  $region22: #{tpu_custom_call.1} parent=0 // pred_check
    _
  $region23: #{tpu_custom_call.1} parent=0 // pred_check_branch
    %22 = sbr.rel (0) target = $region25
  $region24: #{tpu_custom_call.1} parent=0 // pred_region
    _
  $region25: #{tpu_custom_call.1} parent=0 // pred_fallthru
    _
  %v23 = vld [vmem:[%s0] sm:$0xff]
  %v24 = vld [vmem:[%s0 + $0x8] sm:$0xff]
  %v25 = vld [vmem:[%s0 + $0x10] sm:$0xff]
  %v26 = vld [vmem:[%s0 + $0x18] sm:$0xff]
  %v27 = vld [vmem:[%s0 + $0x20] sm:$0xff]
  %v28 = vld [vmem:[%s0 + $0x28] sm:$0xff]
  %v29 = vld [vmem:[%s0 + $0x30] sm:$0xff]
  %v30 = vld [vmem:[%s0 + $0x38] sm:$0xff]
  %v31 = vld [vmem:[%s1] sm:$0xff]
  %v32 = vld [vmem:[%s1 + $0x8] sm:$0xff]
  %v33 = vld [vmem:[%s3] sm:$0x1]
  %v35 = vperm.slane %v33, 0
  %vm37 = vcmask 130048
  %v39 = vsel %vm37, %v23, 0
  %v42 = vsel %vm37, %v24, 0
  %v45 = vsel %vm37, %v25, 0
  %v48 = vsel %vm37, %v26, 0
  %v51 = vsel %vm37, %v27, 0
  %v54 = vsel %vm37, %v28, 0
  %v57 = vsel %vm37, %v29, 0
  %v60 = vsel %vm37, %v30, 0
  %62 = vmatpush.msra.mxu0 0.0
  %63 = vmatpush.msra.mxu0 0.0
  %64 = vmatpush.msra.mxu0 0.0
  %65 = vmatpush.msra.mxu0 0.0
  %66 = vmatpush.msra.mxu0 0.0
  %67 = vmatpush.msra.mxu0 0.0
  %68 = vmatpush.msra.mxu0 0.0
  %69 = vmatpush.msra.mxu0 0.0
  %70 = vmatpush.msra.mxu0 0.0
  %71 = vmatpush.msra.mxu0 0.0
  %72 = vmatpush.msra.mxu0 0.0
  %73 = vmatpush.msra.mxu0 0.0
  %74 = vmatpush.msra.mxu0 0.0
  %75 = vmatpush.msra.mxu0 0.0
  %76 = vmatpush.msra.mxu0 %v32
  %77 = vmatpush.msra.mxu0 %v31
  %78 = vmatmul.f32.gmra.mxu0 %v39
  %v79 = vpop.f32.mrf.mxu0
  %v80 = vadd.f32 %v35, %v79
  %81 = vmatmul.f32.gmra.mxu0 %v42
  %v82 = vpop.f32.mrf.mxu0
  %v83 = vadd.f32 %v35, %v82
  %84 = vmatmul.f32.gmra.mxu0 %v45
  %v85 = vpop.f32.mrf.mxu0
  %v86 = vadd.f32 %v35, %v85
  %87 = vmatmul.f32.gmra.mxu0 %v48
  %v88 = vpop.f32.mrf.mxu0
  %v89 = vadd.f32 %v35, %v88
  %90 = vmatmul.f32.gmra.mxu0 %v51
  %v91 = vpop.f32.mrf.mxu0
  %v92 = vadd.f32 %v35, %v91
  %93 = vmatmul.f32.gmra.mxu0 %v54
  %v94 = vpop.f32.mrf.mxu0
  %v95 = vadd.f32 %v35, %v94
  %96 = vmatmul.f32.gmra.mxu0 %v57
  %v97 = vpop.f32.mrf.mxu0
  %v98 = vadd.f32 %v35, %v97
  %99 = vmatmul.f32.gmra.mxu0 %v60
  %v100 = vpop.f32.mrf.mxu0
  %v101 = vadd.f32 %v35, %v100
  %102 = vdwg.mxu0
  %vm103 = vcmask 261120
  %104 = vst.msk [vmem:[#allocation2] sm:$0xff] %vm103, %v80
  %105 = vst.msk [vmem:[#allocation2 + $0x8] sm:$0xff] %vm103, %v83
  %106 = vst.msk [vmem:[#allocation2 + $0x10] sm:$0xff] %vm103, %v86
  %107 = vst.msk [vmem:[#allocation2 + $0x18] sm:$0xff] %vm103, %v89
  %108 = vst.msk [vmem:[#allocation2 + $0x20] sm:$0xff] %vm103, %v92
  %109 = vst.msk [vmem:[#allocation2 + $0x28] sm:$0xff] %vm103, %v95
  %110 = vst.msk [vmem:[#allocation2 + $0x30] sm:$0xff] %vm103, %v98
  %111 = vst.msk [vmem:[#allocation2 + $0x38] sm:$0xff] %vm103, %v101
  %v112 = vld [vmem:[%s2] sm:$0xff]
  %v113 = vld [vmem:[%s2 + $0x8] sm:$0xff]
  %v114 = vld [vmem:[%s2 + $0x10] sm:$0xff]
  %v115 = vld [vmem:[%s2 + $0x18] sm:$0xff]
  %v116 = vld [vmem:[#allocation2] sm:$0xff]
  %v118 = vsel %vm103, 0.0, 0
  %120 = vmatpush.msra.mxu0 0.0
  %121 = vmatpush.msra.mxu0 0.0
  %122 = vmatpush.msra.mxu0 0.0
  %123 = vmatpush.msra.mxu0 0.0
  %124 = vmatpush.msra.mxu0 0.0
  %125 = vmatpush.msra.mxu0 0.0
  %126 = vmatpush.msra.mxu0 0.0
  %127 = vmatpush.msra.mxu0 0.0
  %128 = vmatpush.msra.mxu0 0.0
  %129 = vmatpush.msra.mxu0 0.0
  %130 = vmatpush.msra.mxu0 0.0
  %131 = vmatpush.msra.mxu0 0.0
  %132 = vmatpush.msra.mxu0 %v115
  %133 = vmatpush.msra.mxu0 %v114
  %134 = vmatpush.msra.mxu0 %v113
  %135 = vmatpush.msra.mxu0 %v112
  %136 = vmatmul.f32.gmra.mxu0 %v118
  %v137 = vpop.f32.mrf.mxu0
  %v138 = vadd.f32 0.0, %v137
  %139 = vdwg.mxu0
  %v140 = vadd.f32 %v116, %v138
  %v141 = vtanh.pop %v140
  %s142 = scalar_lea.vmem [#allocation2], 8
  %v143 = vld [vmem:[%s142] sm:$0xff]
  %v145 = vsel %vm103, %v141, 0
  %147 = vmatpush.msra.mxu0 0.0
  %148 = vmatpush.msra.mxu0 0.0
  %149 = vmatpush.msra.mxu0 0.0
  %150 = vmatpush.msra.mxu0 0.0
  %151 = vmatpush.msra.mxu0 0.0
  %152 = vmatpush.msra.mxu0 0.0
  %153 = vmatpush.msra.mxu0 0.0
  %154 = vmatpush.msra.mxu0 0.0
  %155 = vmatpush.msra.mxu0 0.0
  %156 = vmatpush.msra.mxu0 0.0
  %157 = vmatpush.msra.mxu0 0.0
  %158 = vmatpush.msra.mxu0 0.0
  %159 = vmatpush.msra.mxu0 %v115
  %160 = vmatpush.msra.mxu0 %v114
  %161 = vmatpush.msra.mxu0 %v113
  %162 = vmatpush.msra.mxu0 %v112
  %163 = vmatmul.f32.gmra.mxu0 %v145
  %v164 = vpop.f32.mrf.mxu0
  %v165 = vadd.f32 0.0, %v164
  %166 = vdwg.mxu0
  %v167 = vadd.f32 %v143, %v165
  %v168 = vtanh.pop %v167
  %s169 = scalar_lea.vmem [#allocation2], 16
  %v170 = vld [vmem:[%s169] sm:$0xff]
  %v172 = vsel %vm103, %v168, 0
  %174 = vmatpush.msra.mxu0 0.0
  %175 = vmatpush.msra.mxu0 0.0
  %176 = vmatpush.msra.mxu0 0.0
  %177 = vmatpush.msra.mxu0 0.0
  %178 = vmatpush.msra.mxu0 0.0
  %179 = vmatpush.msra.mxu0 0.0
  %180 = vmatpush.msra.mxu0 0.0
  %181 = vmatpush.msra.mxu0 0.0
  %182 = vmatpush.msra.mxu0 0.0
  %183 = vmatpush.msra.mxu0 0.0
  %184 = vmatpush.msra.mxu0 0.0
  %185 = vmatpush.msra.mxu0 0.0
  %186 = vmatpush.msra.mxu0 %v115
  %187 = vmatpush.msra.mxu0 %v114
  %188 = vmatpush.msra.mxu0 %v113
  %189 = vmatpush.msra.mxu0 %v112
  %190 = vmatmul.f32.gmra.mxu0 %v172
  %v191 = vpop.f32.mrf.mxu0
  %v192 = vadd.f32 0.0, %v191
  %193 = vdwg.mxu0
  %v194 = vadd.f32 %v170, %v192
  %v195 = vtanh.pop %v194
  %s196 = scalar_lea.vmem [#allocation2], 24
  %v197 = vld [vmem:[%s196] sm:$0xff]
  %v199 = vsel %vm103, %v195, 0
  %201 = vmatpush.msra.mxu0 0.0
  %202 = vmatpush.msra.mxu0 0.0
  %203 = vmatpush.msra.mxu0 0.0
  %204 = vmatpush.msra.mxu0 0.0
  %205 = vmatpush.msra.mxu0 0.0
  %206 = vmatpush.msra.mxu0 0.0
  %207 = vmatpush.msra.mxu0 0.0
  %208 = vmatpush.msra.mxu0 0.0
  %209 = vmatpush.msra.mxu0 0.0
  %210 = vmatpush.msra.mxu0 0.0
  %211 = vmatpush.msra.mxu0 0.0
  %212 = vmatpush.msra.mxu0 0.0
  %213 = vmatpush.msra.mxu0 %v115
  %214 = vmatpush.msra.mxu0 %v114
  %215 = vmatpush.msra.mxu0 %v113
  %216 = vmatpush.msra.mxu0 %v112
  %217 = vmatmul.f32.gmra.mxu0 %v199
  %v218 = vpop.f32.mrf.mxu0
  %v219 = vadd.f32 0.0, %v218
  %220 = vdwg.mxu0
  %v221 = vadd.f32 %v197, %v219
  %v222 = vtanh.pop %v221
  %s223 = scalar_lea.vmem [#allocation2], 32
  %v224 = vld [vmem:[%s223] sm:$0xff]
  %v226 = vsel %vm103, %v222, 0
  %228 = vmatpush.msra.mxu0 0.0
  %229 = vmatpush.msra.mxu0 0.0
  %230 = vmatpush.msra.mxu0 0.0
  %231 = vmatpush.msra.mxu0 0.0
  %232 = vmatpush.msra.mxu0 0.0
  %233 = vmatpush.msra.mxu0 0.0
  %234 = vmatpush.msra.mxu0 0.0
  %235 = vmatpush.msra.mxu0 0.0
  %236 = vmatpush.msra.mxu0 0.0
  %237 = vmatpush.msra.mxu0 0.0
  %238 = vmatpush.msra.mxu0 0.0
  %239 = vmatpush.msra.mxu0 0.0
  %240 = vmatpush.msra.mxu0 %v115
  %241 = vmatpush.msra.mxu0 %v114
  %242 = vmatpush.msra.mxu0 %v113
  %243 = vmatpush.msra.mxu0 %v112
  %244 = vmatmul.f32.gmra.mxu0 %v226
  %v245 = vpop.f32.mrf.mxu0
  %v246 = vadd.f32 0.0, %v245
  %247 = vdwg.mxu0
  %v248 = vadd.f32 %v224, %v246
  %v249 = vtanh.pop %v248
  %s250 = scalar_lea.vmem [#allocation2], 40
  %v251 = vld [vmem:[%s250] sm:$0xff]
  %v253 = vsel %vm103, %v249, 0
  %255 = vmatpush.msra.mxu0 0.0
  %256 = vmatpush.msra.mxu0 0.0
  %257 = vmatpush.msra.mxu0 0.0
  %258 = vmatpush.msra.mxu0 0.0
  %259 = vmatpush.msra.mxu0 0.0
  %260 = vmatpush.msra.mxu0 0.0
  %261 = vmatpush.msra.mxu0 0.0
  %262 = vmatpush.msra.mxu0 0.0
  %263 = vmatpush.msra.mxu0 0.0
  %264 = vmatpush.msra.mxu0 0.0
  %265 = vmatpush.msra.mxu0 0.0
  %266 = vmatpush.msra.mxu0 0.0
  %267 = vmatpush.msra.mxu0 %v115
  %268 = vmatpush.msra.mxu0 %v114
  %269 = vmatpush.msra.mxu0 %v113
  %270 = vmatpush.msra.mxu0 %v112
  %271 = vmatmul.f32.gmra.mxu0 %v253
  %v272 = vpop.f32.mrf.mxu0
  %v273 = vadd.f32 0.0, %v272
  %274 = vdwg.mxu0
  %v275 = vadd.f32 %v251, %v273
  %v276 = vtanh.pop %v275
  %s277 = scalar_lea.vmem [#allocation2], 48
  %v278 = vld [vmem:[%s277] sm:$0xff]
  %v280 = vsel %vm103, %v276, 0
  %282 = vmatpush.msra.mxu0 0.0
  %283 = vmatpush.msra.mxu0 0.0
  %284 = vmatpush.msra.mxu0 0.0
  %285 = vmatpush.msra.mxu0 0.0
  %286 = vmatpush.msra.mxu0 0.0
  %287 = vmatpush.msra.mxu0 0.0
  %288 = vmatpush.msra.mxu0 0.0
  %289 = vmatpush.msra.mxu0 0.0
  %290 = vmatpush.msra.mxu0 0.0
  %291 = vmatpush.msra.mxu0 0.0
  %292 = vmatpush.msra.mxu0 0.0
  %293 = vmatpush.msra.mxu0 0.0
  %294 = vmatpush.msra.mxu0 %v115
  %295 = vmatpush.msra.mxu0 %v114
  %296 = vmatpush.msra.mxu0 %v113
  %297 = vmatpush.msra.mxu0 %v112
  %298 = vmatmul.f32.gmra.mxu0 %v280
  %v299 = vpop.f32.mrf.mxu0
  %v300 = vadd.f32 0.0, %v299
  %301 = vdwg.mxu0
  %v302 = vadd.f32 %v278, %v300
  %v303 = vtanh.pop %v302
  %s304 = scalar_lea.vmem [#allocation2], 56
  %v305 = vld [vmem:[%s304] sm:$0xff]
  %v307 = vsel %vm103, %v303, 0
  %309 = vmatpush.msra.mxu0 0.0
  %310 = vmatpush.msra.mxu0 0.0
  %311 = vmatpush.msra.mxu0 0.0
  %312 = vmatpush.msra.mxu0 0.0
  %313 = vmatpush.msra.mxu0 0.0
  %314 = vmatpush.msra.mxu0 0.0
  %315 = vmatpush.msra.mxu0 0.0
  %316 = vmatpush.msra.mxu0 0.0
  %317 = vmatpush.msra.mxu0 0.0
  %318 = vmatpush.msra.mxu0 0.0
  %319 = vmatpush.msra.mxu0 0.0
  %320 = vmatpush.msra.mxu0 0.0
  %321 = vmatpush.msra.mxu0 %v115
  %322 = vmatpush.msra.mxu0 %v114
  %323 = vmatpush.msra.mxu0 %v113
  %324 = vmatpush.msra.mxu0 %v112
  %325 = vmatmul.f32.gmra.mxu0 %v307
  %v326 = vpop.f32.mrf.mxu0
  %v327 = vadd.f32 0.0, %v326
  %328 = vdwg.mxu0
  %v329 = vadd.f32 %v305, %v327
  %v330 = vtanh.pop %v329
  %v331 = vld [vmem:[%s4] sm:$0xff]
  %v332 = vld [vmem:[%s4 + $0x8] sm:$0xff]
  %v333 = vld [vmem:[%s4 + $0x10] sm:$0xff]
  %v334 = vld [vmem:[%s4 + $0x18] sm:$0xff]
  %v335 = vld [vmem:[%s5] sm:$0x1]
  %v337 = vperm.slane %v335, 0
  %v340 = vsel %vm103, %v330, 0
  %342 = vmatpush.msra.mxu0 0.0
  %343 = vmatpush.msra.mxu0 0.0
  %344 = vmatpush.msra.mxu0 0.0
  %345 = vmatpush.msra.mxu0 0.0
  %346 = vmatpush.msra.mxu0 0.0
  %347 = vmatpush.msra.mxu0 0.0
  %348 = vmatpush.msra.mxu0 0.0
  %349 = vmatpush.msra.mxu0 0.0
  %350 = vmatpush.msra.mxu0 0.0
  %351 = vmatpush.msra.mxu0 0.0
  %352 = vmatpush.msra.mxu0 0.0
  %353 = vmatpush.msra.mxu0 0.0
  %354 = vmatpush.msra.mxu0 %v334
  %355 = vmatpush.msra.mxu0 %v333
  %356 = vmatpush.msra.mxu0 %v332
  %357 = vmatpush.msra.mxu0 %v331
  %358 = vmatmul.f32.gmra.mxu0 %v340
  %v359 = vpop.f32.mrf.mxu0
  %v360 = vadd.f32 %v337, %v359
  %361 = vdwg.mxu0
  %vm362 = vcmask 31744
  %363 = vst.msk [vmem:[%s6] sm:$0xff] %vm362, %v360
  // Predicated region
  $region26: #{tpu_custom_call.1} parent=0 // pred_check
    _
  $region27: #{tpu_custom_call.1} parent=0 // pred_check_branch
    %365 = sbr.rel (0) target = $region29
  $region28: #{tpu_custom_call.1} parent=0 // pred_region
    _
  $region29: #{tpu_custom_call.1} parent=0 // pred_fallthru
    _
  // Predicated region
  $region30: #{tpu_custom_call.1} parent=0 // pred_check
    _
  $region31: #{tpu_custom_call.1} parent=0 // pred_check_branch
    %367 = sbr.rel (0) target = $region33
  $region32: #{tpu_custom_call.1} parent=0 // pred_region
    _
  $region33: #{tpu_custom_call.1} parent=0 // pred_fallthru
    _

</llo_original>
